<compile_context>
chip_gen: v5e
topology: v5e:2x2
jax: 0.10.0
libtpu: 0.0.40
codegen_flags: <defaults>
</compile_context>

<pallas_src>
import math

import jax
import jax.numpy as jnp
from jax.experimental import pallas as pl
from jax.experimental.pallas import tpu as pltpu

_GELU_C = math.sqrt(2.0 / math.pi)


def _round_up(x, m):
    return (x + m - 1) // m * m


def _sublane(dtype):
    # sublane packing multiple: 8 for f32, 16 for bf16, 32 for int8/fp8
    return max(8, 32 // jnp.dtype(dtype).itemsize)


def _gelu_tanh_f32(h):
    return 0.5 * h * (1.0 + jnp.tanh(_GELU_C * (h + 0.044715 * h * h * h)))


def _vmem_budget_bytes():
    """Per-generation scoped-VMEM budget (leave headroom below physical)."""
    try:
        kind = jax.devices()[0].device_kind.lower()
    except Exception:
        kind = ""
    if "v7" in kind or "7x" in kind:
        return 52 * 1024 * 1024      # v7x: 64 MiB physical per TC
    return 100 * 1024 * 1024         # v5e / v6e: 128 MiB physical


# --------------------------------------------------------------------------
# Kernels
# --------------------------------------------------------------------------
def _ffn_kernel_multi(x_ref, w1_ref, b1_ref, w2_ref, b2_ref, o_ref, acc_ref):
    # x_ref: (tm, Dp) bf16, w1_ref: (Dp, tk) bf16, b1_ref: (1, tk) f32,
    # w2_ref: (tk, Dp) bf16, b2_ref: (1, Dp) f32, o_ref: (tm, Dp), acc_ref f32.
    k = pl.program_id(1)

    @pl.when(k == 0)
    def _():
        acc_ref[...] = jnp.zeros_like(acc_ref)

    # first linear (partial over the current hidden tile), f32 accumulation
    h = jnp.dot(x_ref[...], w1_ref[...], preferred_element_type=jnp.float32)
    h = h + b1_ref[...]
    # tanh-approx GELU in f32 (matches the reference GELU module)
    g = _gelu_tanh_f32(h)
    # second linear: accumulate this hidden tile's contribution
    acc_ref[...] += jnp.dot(
        g.astype(w2_ref.dtype), w2_ref[...], preferred_element_type=jnp.float32
    )

    @pl.when(k == pl.num_programs(1) - 1)
    def _():
        o_ref[...] = (acc_ref[...] + b2_ref[...]).astype(o_ref.dtype)


def _ffn_kernel_single(x_ref, w1_ref, b1_ref, w2_ref, b2_ref, o_ref):
    # Single hidden tile: no accumulator scratch, write straight to output.
    h = jnp.dot(x_ref[...], w1_ref[...], preferred_element_type=jnp.float32)
    h = h + b1_ref[...]
    g = _gelu_tanh_f32(h)
    y = jnp.dot(g.astype(w2_ref.dtype), w2_ref[...],
                preferred_element_type=jnp.float32)
    o_ref[...] = (y + b2_ref[...]).astype(o_ref.dtype)


# --------------------------------------------------------------------------
# Parameter prep (padding + bf16 cast hoisted out of the per-call path)
# --------------------------------------------------------------------------
def prepare_ffn_params(w1, b1, w2, b2, *, mm_dtype=jnp.bfloat16):
    """Pad (exactly, with zeros) and cast weights once.

    Padding is numerically exact: padded hidden units have b1=0 and zero W2
    rows (GELU(0)=0 contributes nothing); padded feature columns have zero W1
    rows / W2 columns and are sliced off after the kernel.
    """
    D, H = w1.shape
    Dp = _round_up(D, 128)    # lane-dense feature dim -> unmasked stores
    Hp = _round_up(H, 256)    # 256-aligned hidden dim (256-wide MXU on v6e/v7x)
    w1p = jnp.pad(w1, ((0, Dp - D), (0, Hp - H))).astype(mm_dtype)
    w2p = jnp.pad(w2, ((0, Hp - H), (0, Dp - D))).astype(mm_dtype)
    b1p = jnp.pad(b1, (0, Hp - H)).astype(jnp.float32).reshape(1, Hp)
    b2p = jnp.pad(b2, (0, Dp - D)).astype(jnp.float32).reshape(1, Dp)
    return dict(w1=w1p, b1=b1p, w2=w2p, b2=b2p,
                D=D, H=H, Dp=Dp, Hp=Hp, mm_dtype=mm_dtype)


# --------------------------------------------------------------------------
# Wrapper
# --------------------------------------------------------------------------
def feedforward_pallas(x, params, *, tm=512, tk=1024, vmem_limit_bytes=None):
    """x: (..., D). Returns same shape/dtype as x."""
    w1p, b1p, w2p, b2p = params["w1"], params["b1"], params["w2"], params["b2"]
    D, Dp, Hp = params["D"], params["Dp"], params["Hp"]
    mm_dtype = params["mm_dtype"]
    out_dtype = x.dtype

    orig_shape = x.shape
    x2 = x.reshape(-1, D).astype(mm_dtype)   # bf16 MXU operands
    N = x2.shape[0]

    if vmem_limit_bytes is None:
        vmem_limit_bytes = _vmem_budget_bytes()

    # ---- row tile: dtype-specific sublane multiple, >=2 tiles when possible
    sub = max(_sublane(mm_dtype), _sublane(out_dtype))
    tm = max(sub, _round_up(min(tm, _round_up(N, sub)), sub))
    if pl.cdiv(N, tm) < 2 and N > sub:
        # split across both TensorCores on v7x (row axis is "parallel")
        tm = _round_up(pl.cdiv(N, 2), sub)
    Np = _round_up(N, tm)
    n_rows = Np // tm

    # ---- hidden (reduction) tile: budgeted by VMEM, 256-aligned, divides Hp
    w_isz = jnp.dtype(mm_dtype).itemsize
    x_isz = jnp.dtype(mm_dtype).itemsize
    o_isz = jnp.dtype(out_dtype).itemsize
    fixed = (2 * tm * Dp * x_isz        # x tile (double-buffered)
             + 2 * tm * Dp * o_isz      # out tile (double-buffered)
             + tm * Dp * 4              # f32 accumulator scratch
             + 2 * Dp * 4)              # b2
    per_tk = (2 * 2 * Dp * w_isz        # W1 + W2 tiles (double-buffered)
              + 2 * 4                   # b1
              + tm * 4)                 # f32 hidden intermediate
    avail = int(vmem_limit_bytes * 0.8) - fixed
    tk_budget = max(256, avail // per_tk) if avail > 0 else 256
    tk = min(tk, tk_budget, Hp)
    tk = max(256, (tk // 256) * 256)
    tk = min(tk, Hp)
    while tk > 256 and Hp % tk:
        tk -= 256
    if Hp % tk:                          # safety net (Hp is a 256-multiple)
        tk = 256
    n_k = Hp // tk

    # ---- pad activations (exact: zero rows / zero feature columns)
    if (Np, Dp) != (N, D):
        x2 = jnp.pad(x2, ((0, Np - N), (0, Dp - D)))

    cost = pl.CostEstimate(
        flops=4 * Np * Dp * Hp,                      # two matmuls
        transcendentals=Np * Hp,                     # tanh in GELU
        bytes_accessed=(Np * Dp * (x_isz + o_isz)    # x read + y write
                        + n_rows * 2 * Dp * Hp * w_isz   # weight re-stream
                        + n_rows * (Hp + Dp) * 4),       # biases
    )

    if n_k == 1:
        grid_spec = pltpu.PrefetchScalarGridSpec(
            num_scalar_prefetch=0,
            grid=(n_rows,),
            in_specs=[
                pl.BlockSpec((tm, Dp), lambda i: (i, 0)),   # x rows
                pl.BlockSpec((Dp, tk), lambda i: (0, 0)),   # W1
                pl.BlockSpec((1, tk), lambda i: (0, 0)),    # b1
                pl.BlockSpec((tk, Dp), lambda i: (0, 0)),   # W2
                pl.BlockSpec((1, Dp), lambda i: (0, 0)),    # b2
            ],
            out_specs=pl.BlockSpec((tm, Dp), lambda i: (i, 0)),
        )
        kernel = _ffn_kernel_single
        dim_sem = ("parallel",)
    else:
        grid_spec = pltpu.PrefetchScalarGridSpec(
            num_scalar_prefetch=0,
            grid=(n_rows, n_k),
            in_specs=[
                pl.BlockSpec((tm, Dp), lambda i, k: (i, 0)),   # x rows (resident over k)
                pl.BlockSpec((Dp, tk), lambda i, k: (0, k)),   # W1 column tile (streamed)
                pl.BlockSpec((1, tk), lambda i, k: (0, k)),    # b1 tile
                pl.BlockSpec((tk, Dp), lambda i, k: (k, 0)),   # W2 row tile (streamed)
                pl.BlockSpec((1, Dp), lambda i, k: (0, 0)),    # b2 (constant)
            ],
            out_specs=pl.BlockSpec((tm, Dp), lambda i, k: (i, 0)),
            scratch_shapes=[pltpu.VMEM((tm, Dp), jnp.float32)],
        )
        kernel = _ffn_kernel_multi
        dim_sem = ("parallel", "arbitrary")

    out = pl.pallas_call(
        kernel,
        out_shape=jax.ShapeDtypeStruct((Np, Dp), out_dtype),
        grid_spec=grid_spec,
        compiler_params=pltpu.CompilerParams(
            dimension_semantics=dim_sem,
            vmem_limit_bytes=vmem_limit_bytes,
        ),
        cost_estimate=cost,
    )(x2, w1p, b1p, w2p, b2p)

    if (Np, Dp) != (N, D):
        out = out[:N, :D]
    return out.reshape(orig_shape)


# --------------------------------------------------------------------------
# Reference (emulates the kernel's bf16 MXU operands with f32 accumulation)
# --------------------------------------------------------------------------
def _reference_ffn(x, w1, b1, w2, b2, mm_dtype=jnp.bfloat16):
    f32 = jnp.float32
    xq = x.astype(mm_dtype).astype(f32)
    w1q = w1.astype(mm_dtype).astype(f32)
    w2q = w2.astype(mm_dtype).astype(f32)
    h = xq @ w1q + b1.astype(f32)
    g = _gelu_tanh_f32(h)
    gq = g.astype(mm_dtype).astype(f32)
    return gq @ w2q + b2.astype(f32)


if __name__ == "__main__":
    key = jax.random.PRNGKey(0)

    # ---- primary test: shapes implied by the module (B=2, S=8, dim=32, hidden=64)
    B, S, D, H = 2, 8, 32, 64
    kx, k1, k2, k3, k4, key = jax.random.split(key, 6)
    x = jax.random.normal(kx, (B, S, D), dtype=jnp.float32)
    bound1 = 1.0 / math.sqrt(D)
    bound2 = 1.0 / math.sqrt(H)
    w1 = jax.random.uniform(k1, (D, H), jnp.float32, -bound1, bound1)
    b1 = jax.random.uniform(k2, (H,), jnp.float32, -bound1, bound1)
    w2 = jax.random.uniform(k3, (H, D), jnp.float32, -bound2, bound2)
    b2 = jax.random.uniform(k4, (D,), jnp.float32, -bound2, bound2)

    params = prepare_ffn_params(w1, b1, w2, b2)            # padded + bf16, once
    y = feedforward_pallas(x, params)
    y = jax.block_until_ready(y)
    y_ref = _reference_ffn(x.reshape(-1, D), w1, b1, w2, b2).reshape(B, S, D)
    assert jnp.allclose(y, y_ref, atol=2e-2, rtol=2e-2), "mismatch vs reference (test 1)"

    # ---- secondary test: exercises row padding, >=2 row tiles, multi-step H grid
    B2, S2, D2, H2 = 3, 50, 96, 300
    kx, k1, k2, k3, k4, key = jax.random.split(key, 6)
    x_b = jax.random.normal(kx, (B2, S2, D2), dtype=jnp.float32)
    bb1 = 1.0 / math.sqrt(D2)
    bb2 = 1.0 / math.sqrt(H2)
    w1_b = jax.random.uniform(k1, (D2, H2), jnp.float32, -bb1, bb1)
    b1_b = jax.random.uniform(k2, (H2,), jnp.float32, -bb1, bb1)
    w2_b = jax.random.uniform(k3, (H2, D2), jnp.float32, -bb2, bb2)
    b2_b = jax.random.uniform(k4, (D2,), jnp.float32, -bb2, bb2)

    params_b = prepare_ffn_params(w1_b, b1_b, w2_b, b2_b)
    y_b = feedforward_pallas(x_b, params_b, tm=64, tk=256)
    y_b = jax.block_until_ready(y_b)
    y_b_ref = _reference_ffn(x_b.reshape(-1, D2), w1_b, b1_b, w2_b, b2_b).reshape(B2, S2, D2)
    assert jnp.allclose(y_b, y_b_ref, atol=2e-2, rtol=2e-2), "mismatch vs reference (test 2)"

    print("KERNEL_OK")
</pallas_src>

<mosaic_0001>
module attributes {stable_mosaic.version = 11 : i64} {
  func.func @_ffn_kernel_single(%arg0: i32, %arg1: memref<16x128xbf16, #tpu.memory_space<vmem>>, %arg2: memref<128x256xbf16, #tpu.memory_space<vmem>>, %arg3: memref<1x256xf32, #tpu.memory_space<vmem>>, %arg4: memref<256x128xbf16, #tpu.memory_space<vmem>>, %arg5: memref<1x128xf32, #tpu.memory_space<vmem>>, %arg6: memref<16x128xf32, #tpu.memory_space<vmem>>) attributes {dimension_semantics = [#tpu.dimension_semantics<parallel>], iteration_bounds = array<i64: 1>, scalar_prefetch = 0 : i64, scratch_operands = 0 : i64, tpu.core_type = #tpu.core_type<tc>, window_params = [{transform_indices = @transform_0, window_bounds = array<i64: 16, 128>}, {pipeline_mode = #tpu.pipeline_mode<synchronous>, transform_indices = @transform_1, window_bounds = array<i64: 128, 256>}, {pipeline_mode = #tpu.pipeline_mode<synchronous>, transform_indices = @transform_2, window_bounds = array<i64: 1, 256>}, {pipeline_mode = #tpu.pipeline_mode<synchronous>, transform_indices = @transform_3, window_bounds = array<i64: 256, 128>}, {pipeline_mode = #tpu.pipeline_mode<synchronous>, transform_indices = @transform_4, window_bounds = array<i64: 1, 128>}, {transform_indices = @transform_5, window_bounds = array<i64: 16, 128>}]} {
    %c0 = arith.constant 0 : index
    %c0_0 = arith.constant 0 : index
    %0 = vector.load %arg1[%c0, %c0_0] : memref<16x128xbf16, #tpu.memory_space<vmem>>, vector<16x128xbf16>
    %c0_1 = arith.constant 0 : index
    %c0_2 = arith.constant 0 : index
    %1 = vector.load %arg2[%c0_1, %c0_2] : memref<128x256xbf16, #tpu.memory_space<vmem>>, vector<128x256xbf16>
    %cst = arith.constant dense<0.000000e+00> : vector<16x256xf32>
    %2 = tpu.matmul %0, %1, %cst {dimension_numbers = #tpu.dot_dimension_numbers<[1], [0], [0], [1], [0, 0, 1, 1], [], []>} : vector<16x128xbf16>, vector<128x256xbf16>, vector<16x256xf32> -> vector<16x256xf32>
    %c0_3 = arith.constant 0 : index
    %c0_4 = arith.constant 0 : index
    %3 = vector.load %arg3[%c0_3, %c0_4] : memref<1x256xf32, #tpu.memory_space<vmem>>, vector<1x256xf32>
    %4 = vector.broadcast %3 : vector<1x256xf32> to vector<16x256xf32>
    %5 = arith.addf %2, %4 : vector<16x256xf32>
    %cst_5 = arith.constant 5.000000e-01 : f32
    %6 = vector.broadcast %cst_5 : f32 to vector<16x256xf32>
    %7 = arith.mulf %6, %5 : vector<16x256xf32>
    %cst_6 = arith.constant 4.471500e-02 : f32
    %8 = vector.broadcast %cst_6 : f32 to vector<16x256xf32>
    %9 = arith.mulf %8, %5 : vector<16x256xf32>
    %10 = arith.mulf %9, %5 : vector<16x256xf32>
    %11 = arith.mulf %10, %5 : vector<16x256xf32>
    %12 = arith.addf %5, %11 : vector<16x256xf32>
    %cst_7 = arith.constant 0.797884583 : f32
    %13 = vector.broadcast %cst_7 : f32 to vector<16x256xf32>
    %14 = arith.mulf %13, %12 : vector<16x256xf32>
    %15 = math.tanh %14 : vector<16x256xf32>
    %cst_8 = arith.constant 1.000000e+00 : f32
    %16 = vector.broadcast %cst_8 : f32 to vector<16x256xf32>
    %17 = arith.addf %16, %15 : vector<16x256xf32>
    %18 = arith.mulf %7, %17 : vector<16x256xf32>
    %19 = arith.truncf %18 : vector<16x256xf32> to vector<16x256xbf16>
    %c0_9 = arith.constant 0 : index
    %c0_10 = arith.constant 0 : index
    %20 = vector.load %arg4[%c0_9, %c0_10] : memref<256x128xbf16, #tpu.memory_space<vmem>>, vector<256x128xbf16>
    %cst_11 = arith.constant dense<0.000000e+00> : vector<16x128xf32>
    %21 = tpu.matmul %19, %20, %cst_11 {dimension_numbers = #tpu.dot_dimension_numbers<[1], [0], [0], [1], [0, 0, 1, 1], [], []>} : vector<16x256xbf16>, vector<256x128xbf16>, vector<16x128xf32> -> vector<16x128xf32>
    %c0_12 = arith.constant 0 : index
    %c0_13 = arith.constant 0 : index
    %22 = vector.load %arg5[%c0_12, %c0_13] : memref<1x128xf32, #tpu.memory_space<vmem>>, vector<1x128xf32>
    %23 = vector.broadcast %22 : vector<1x128xf32> to vector<16x128xf32>
    %24 = arith.addf %21, %23 : vector<16x128xf32>
    %c0_14 = arith.constant 0 : index
    %c0_15 = arith.constant 0 : index
    %25 = vector.load %arg6[%c0_14, %c0_15] : memref<16x128xf32, #tpu.memory_space<vmem>>, vector<16x128xf32>
    tpu.vector_store %arg6[%c0_14, %c0_15], %24 {strides = array<i32>} : memref<16x128xf32, #tpu.memory_space<vmem>>, vector<16x128xf32>,
    return
  }
  func.func @transform_0(%arg0: i32) -> (i32, i32) {
    %c0_i32 = arith.constant 0 : i32
    %c0_i32_0 = arith.constant 0 : i32
    return %arg0, %c0_i32 : i32, i32
  }
  func.func @transform_1(%arg0: i32) -> (i32, i32) {
    %c0_i32 = arith.constant 0 : i32
    %c0_i32_0 = arith.constant 0 : i32
    %c0_i32_1 = arith.constant 0 : i32
    return %c0_i32, %c0_i32_0 : i32, i32
  }
  func.func @transform_2(%arg0: i32) -> (i32, i32) {
    %c0_i32 = arith.constant 0 : i32
    %c0_i32_0 = arith.constant 0 : i32
    %c0_i32_1 = arith.constant 0 : i32
    return %c0_i32, %c0_i32_0 : i32, i32
  }
  func.func @transform_3(%arg0: i32) -> (i32, i32) {
    %c0_i32 = arith.constant 0 : i32
    %c0_i32_0 = arith.constant 0 : i32
    %c0_i32_1 = arith.constant 0 : i32
    return %c0_i32, %c0_i32_0 : i32, i32
  }
  func.func @transform_4(%arg0: i32) -> (i32, i32) {
    %c0_i32 = arith.constant 0 : i32
    %c0_i32_0 = arith.constant 0 : i32
    %c0_i32_1 = arith.constant 0 : i32
    return %c0_i32, %c0_i32_0 : i32, i32
  }
  func.func @transform_5(%arg0: i32) -> (i32, i32) {
    %c0_i32 = arith.constant 0 : i32
    %c0_i32_0 = arith.constant 0 : i32
    return %arg0, %c0_i32 : i32, i32
  }
}

</mosaic_0001>

<llo_original>
// kernel: tpu_custom_call.1
$region0: #{tpu_custom_call.1}
  #allocation0 [shape = 'u32[]', space=smem, size = 0x4, offset = 0x4, fixed_abs, tag = 'smem constant byte address 0x4 - core index']
  #allocation1 [shape = 'u32[72,128]{1,0:T(1,128)}', space=vmem, size = 0x9000, scoped, tag = 'internal scratch']
  %s0 = inlined_call_operand.hbm [shape: bf16[16,128], index: 0, kind: input, shape index: {}]
  %s1 = inlined_call_operand.hbm [shape: bf16[128,256], index: 1, kind: input, shape index: {}]
  %s2 = inlined_call_operand.hbm [shape: f32[1,256], index: 2, kind: input, shape index: {}]
  %s3 = inlined_call_operand.hbm [shape: bf16[256,128], index: 3, kind: input, shape index: {}]
  %s4 = inlined_call_operand.vmem [shape: f32[1,128], index: 4, kind: input, shape index: {}]
  %s5 = inlined_call_operand.hbm [shape: f32[16,128], index: 5, kind: output, shape index: {}]
  %s6 = sld [smem:[#allocation0]]
  $region46: #{tpu_custom_call.1} parent=0
    _
  %s8 = ssub.s32 1, %s6
  %s9 = scalar_select 0, %s8, %s6
  $region1: #{tpu_custom_call.1} parent=0
    #allocation2 [shape = 'u8[4096]{0}', space=vmem, size = 0x1000, scoped, tag = 'input window, operand 0, single buffered']
    #allocation3 [shape = 's32[1]{0}', space=sflag, size = 0x4, scoped, tag = 'scoped memory for tpu_custom_call.1']
    #allocation4 [shape = 's32[1]{0}', space=sflag, size = 0x4, scoped, tag = 'scoped memory for tpu_custom_call.1']
    #allocation5 [shape = 'u8[65536]{0}', space=vmem, size = 0x10000, scoped, tag = 'input window, operand 1, single buffered']
    #allocation6 [shape = 's32[1]{0}', space=sflag, size = 0x4, scoped, tag = 'scoped memory for tpu_custom_call.1']
    #allocation7 [shape = 'u8[1024]{0}', space=vmem, size = 0x400, scoped, tag = 'input window, operand 2, single buffered']
    #allocation8 [shape = 'u8[65536]{0}', space=vmem, size = 0x10000, scoped, tag = 'input window, operand 3, single buffered']
    #allocation9 [shape = 's32[1]{0}', space=sflag, size = 0x4, scoped, tag = 'scoped memory for tpu_custom_call.1']
    #allocation10 [shape = 'u8[8192]{0}', space=vmem, size = 0x2000, scoped, tag = 'output window, operand 0, single buffered']
    %10 = vsyncpa [#allocation3], 0
    %11 = vsyncpa [#allocation6], 0
    %12 = vsyncpa [#allocation9], 0
    %13 = vsyncpa [#allocation4], 0
    // Predicated region
    $region2: #{tpu_custom_call.1} parent=1 // pred_check
      _
    $region3: #{tpu_custom_call.1} parent=1 // pred_check_branch
      %15 = sbr.rel (0) target = $region5
    $region4: #{tpu_custom_call.1} parent=1 // pred_region
      %17 = vsyncadd [#allocation3], 0
      %s18 = sshll.u32 %s0, 4
      %s19 = int_to_ptr.hbm [resolvable:$true] %s18
      %s20 = sshll.u32 [#allocation2], 4
      %s21 = int_to_ptr.vmem [resolvable:$true] %s20
      %26 = dma.hbm_to_vmem [thread:$0]  %s19, 128, %s21, [#allocation3], 64, 64, 4
    $region5: #{tpu_custom_call.1} parent=1 // pred_fallthru
      _
    // Predicated region
    $region6: #{tpu_custom_call.1} parent=1 // pred_check
      _
    $region7: #{tpu_custom_call.1} parent=1 // pred_check_branch
      %28 = sbr.rel (0) target = $region9
    $region8: #{tpu_custom_call.1} parent=1 // pred_region
      %30 = vsyncadd [#allocation6], 0
      %s31 = sshll.u32 %s1, 4
      %s32 = int_to_ptr.hbm [resolvable:$true] %s31
      %s33 = sshll.u32 [#allocation5], 4
      %s34 = int_to_ptr.vmem [resolvable:$true] %s33
      %39 = dma.hbm_to_vmem [thread:$0]  %s32, 2048, %s34, [#allocation6], 128, 128, 8
    $region9: #{tpu_custom_call.1} parent=1 // pred_fallthru
      _
    // Predicated region
    $region10: #{tpu_custom_call.1} parent=1 // pred_check
      _
    $region11: #{tpu_custom_call.1} parent=1 // pred_check_branch
      %41 = sbr.rel (0) target = $region13
    $region12: #{tpu_custom_call.1} parent=1 // pred_region
      %43 = vsyncadd [#allocation6], 0
      %s45 = sshll.u32 %s2, 4
      %s46 = int_to_ptr.hbm [resolvable:$true] %s45
      %s47 = sshll.u32 [#allocation7], 4
      %s48 = int_to_ptr.vmem [resolvable:$true] %s47
      %50 = dma.hbm_to_vmem [thread:$0]  %s46, 32, %s48, [#allocation6]
    $region13: #{tpu_custom_call.1} parent=1 // pred_fallthru
      _
    // Predicated region
    $region14: #{tpu_custom_call.1} parent=1 // pred_check
      _
    $region15: #{tpu_custom_call.1} parent=1 // pred_check_branch
      %52 = sbr.rel (0) target = $region17
    $region16: #{tpu_custom_call.1} parent=1 // pred_region
      %54 = vsyncadd [#allocation9], 0
      %s55 = sshll.u32 %s3, 4
      %s56 = int_to_ptr.hbm [resolvable:$true] %s55
      %s57 = sshll.u32 [#allocation8], 4
      %s58 = int_to_ptr.vmem [resolvable:$true] %s57
      %63 = dma.hbm_to_vmem [thread:$0]  %s56, 2048, %s58, [#allocation9], 64, 64, 4
    $region17: #{tpu_custom_call.1} parent=1 // pred_fallthru
      _
    // Predicated region
    $region18: #{tpu_custom_call.1} parent=1 // pred_check
      _
    $region19: #{tpu_custom_call.1} parent=1 // pred_check_branch
      %65 = sbr.rel (0) target = $region21
    $region20: #{tpu_custom_call.1} parent=1 // pred_region
      _
    $region21: #{tpu_custom_call.1} parent=1 // pred_fallthru
      _
    // Predicated region
    $region22: #{tpu_custom_call.1} parent=1 // pred_check
      _
    $region23: #{tpu_custom_call.1} parent=1 // pred_check_branch
      %67 = sbr.rel (0) target = $region25
    $region24: #{tpu_custom_call.1} parent=1 // pred_region
      %69 = dma.done [#allocation3], 128
    $region25: #{tpu_custom_call.1} parent=1 // pred_fallthru
      _
    // Predicated region
    $region26: #{tpu_custom_call.1} parent=1 // pred_check
      _
    $region27: #{tpu_custom_call.1} parent=1 // pred_check_branch
      %71 = sbr.rel (0) target = $region29
    $region28: #{tpu_custom_call.1} parent=1 // pred_region
      %73 = dma.done [#allocation6], 2048
    $region29: #{tpu_custom_call.1} parent=1 // pred_fallthru
      _
    // Predicated region
    $region30: #{tpu_custom_call.1} parent=1 // pred_check
      _
    $region31: #{tpu_custom_call.1} parent=1 // pred_check_branch
      %75 = sbr.rel (0) target = $region33
    $region32: #{tpu_custom_call.1} parent=1 // pred_region
      %77 = dma.done [#allocation6], 32
    $region33: #{tpu_custom_call.1} parent=1 // pred_fallthru
      _
    // Predicated region
    $region34: #{tpu_custom_call.1} parent=1 // pred_check
      _
    $region35: #{tpu_custom_call.1} parent=1 // pred_check_branch
      %79 = sbr.rel (0) target = $region37
    $region36: #{tpu_custom_call.1} parent=1 // pred_region
      %81 = dma.done [#allocation9], 2048
    $region37: #{tpu_custom_call.1} parent=1 // pred_fallthru
      _
    %v82 = vld [vmem:[#allocation2] sm:$0xf]
    %v83 = vld [vmem:[#allocation2 + $0x4] sm:$0xf]
    %v84 = vld [vmem:[#allocation5] sm:$0xff]
    %v85 = vld [vmem:[#allocation5 + $0x8] sm:$0xff]
    %v86 = vld [vmem:[#allocation5 + $0x10] sm:$0xff]
    %v87 = vld [vmem:[#allocation5 + $0x18] sm:$0xff]
    %v88 = vld [vmem:[#allocation5 + $0x20] sm:$0xff]
    %v89 = vld [vmem:[#allocation5 + $0x28] sm:$0xff]
    %v90 = vld [vmem:[#allocation5 + $0x30] sm:$0xff]
    %v91 = vld [vmem:[#allocation5 + $0x38] sm:$0xff]
    %v92 = vld [vmem:[#allocation5 + $0x40] sm:$0xff]
    %v93 = vld [vmem:[#allocation5 + $0x48] sm:$0xff]
    %v94 = vld [vmem:[#allocation5 + $0x50] sm:$0xff]
    %v95 = vld [vmem:[#allocation5 + $0x58] sm:$0xff]
    %v96 = vld [vmem:[#allocation5 + $0x60] sm:$0xff]
    %v97 = vld [vmem:[#allocation5 + $0x68] sm:$0xff]
    %v98 = vld [vmem:[#allocation5 + $0x70] sm:$0xff]
    %v99 = vld [vmem:[#allocation5 + $0x78] sm:$0xff]
    %v100 = vld [vmem:[#allocation7] sm:$0x3]
    %v102 = vperm.slane %v100, 0
    %v103 = vperm.slane %v100, 1
    %v108 = vunpack.c.l.b16 %v82
    %v109 = vunpack.c.l.b16 %v83
    %v110 = vpack.c.b16 %v109, %v108
    %v128 = vunpack.c.l.b16 %v84
    %v129 = vunpack.c.h.b16 %v84
    %v130 = vunpack.c.l.b16 %v85
    %v131 = vunpack.c.h.b16 %v85
    %v132 = vunpack.c.l.b16 %v86
    %v133 = vunpack.c.h.b16 %v86
    %v134 = vunpack.c.l.b16 %v87
    %v135 = vunpack.c.h.b16 %v87
    %v136 = vunpack.c.l.b16 %v88
    %v137 = vunpack.c.h.b16 %v88
    %v138 = vunpack.c.l.b16 %v89
    %v139 = vunpack.c.h.b16 %v89
    %v140 = vunpack.c.l.b16 %v90
    %v141 = vunpack.c.h.b16 %v90
    %v142 = vunpack.c.l.b16 %v91
    %v143 = vunpack.c.h.b16 %v91
    %v144 = vunpack.c.l.b16 %v92
    %v145 = vunpack.c.h.b16 %v92
    %v146 = vunpack.c.l.b16 %v93
    %v147 = vunpack.c.h.b16 %v93
    %v148 = vunpack.c.l.b16 %v94
    %v149 = vunpack.c.h.b16 %v94
    %v150 = vunpack.c.l.b16 %v95
    %v151 = vunpack.c.h.b16 %v95
    %v152 = vunpack.c.l.b16 %v96
    %v153 = vunpack.c.h.b16 %v96
    %v154 = vunpack.c.l.b16 %v97
    %v155 = vunpack.c.h.b16 %v97
    %v156 = vunpack.c.l.b16 %v98
    %v157 = vunpack.c.h.b16 %v98
    %v158 = vunpack.c.l.b16 %v99
    %v159 = vunpack.c.h.b16 %v99
    %v160 = vpack.c.b16 %v130, %v128
    %v161 = vpack.c.b16 %v131, %v129
    %v162 = vpack.c.b16 %v134, %v132
    %v163 = vpack.c.b16 %v135, %v133
    %v164 = vpack.c.b16 %v138, %v136
    %v165 = vpack.c.b16 %v139, %v137
    %v166 = vpack.c.b16 %v142, %v140
    %v167 = vpack.c.b16 %v143, %v141
    %v168 = vpack.c.b16 %v146, %v144
    %v169 = vpack.c.b16 %v147, %v145
    %v170 = vpack.c.b16 %v150, %v148
    %v171 = vpack.c.b16 %v151, %v149
    %v172 = vpack.c.b16 %v154, %v152
    %v173 = vpack.c.b16 %v155, %v153
    %v174 = vpack.c.b16 %v158, %v156
    %v175 = vpack.c.b16 %v159, %v157
    %192 = vmatpush.bf16.msra.mxu0 %v174
    %193 = vmatpush.bf16.msra.mxu0 %v172
    %194 = vmatpush.bf16.msra.mxu0 %v170
    %195 = vmatpush.bf16.msra.mxu0 %v168
    %196 = vmatpush.bf16.msra.mxu0 %v166
    %197 = vmatpush.bf16.msra.mxu0 %v164
    %198 = vmatpush.bf16.msra.mxu0 %v162
    %199 = vmatpush.bf16.msra.mxu0 %v160
    %200 = vmatmul.bf16.gmra.mxu0 %v110
    %v201 = vpop.f32.mrf.mxu0
    %v202 = vadd.f32 %v102, %v201
    %v203 = vpop.f32.mrf.mxu0
    %v204 = vadd.f32 %v102, %v203
    %205 = vdwg.mxu0
    %206 = vmatpush.bf16.msra.mxu0 %v175
    %207 = vmatpush.bf16.msra.mxu0 %v173
    %208 = vmatpush.bf16.msra.mxu0 %v171
    %209 = vmatpush.bf16.msra.mxu0 %v169
    %210 = vmatpush.bf16.msra.mxu0 %v167
    %211 = vmatpush.bf16.msra.mxu0 %v165
    %212 = vmatpush.bf16.msra.mxu0 %v163
    %213 = vmatpush.bf16.msra.mxu0 %v161
    %214 = vmatmul.bf16.gmra.mxu0 %v110
    %v215 = vpop.f32.mrf.mxu0
    %v216 = vadd.f32 %v103, %v215
    %v217 = vpop.f32.mrf.mxu0
    %v218 = vadd.f32 %v103, %v217
    %219 = vdwg.mxu0
    %v220 = vmul.f32 %v202, 0.5
    %v221 = vmul.f32 %v216, 0.5
    %v222 = vmul.f32 %v204, 0.5
    %v223 = vmul.f32 %v218, 0.5
    %v224 = vmul.f32 %v202, 0.044715
    %v225 = vmul.f32 %v216, 0.044715
    %v226 = vmul.f32 %v204, 0.044715
    %v227 = vmul.f32 %v218, 0.044715
    %v228 = vmul.f32 %v224, %v202
    %v229 = vmul.f32 %v225, %v216
    %v230 = vmul.f32 %v226, %v204
    %v231 = vmul.f32 %v227, %v218
    %v232 = vmul.f32 %v228, %v202
    %v233 = vmul.f32 %v229, %v216
    %v234 = vmul.f32 %v230, %v204
    %v235 = vmul.f32 %v231, %v218
    %v236 = vadd.f32 %v202, %v232
    %v237 = vadd.f32 %v216, %v233
    %v238 = vadd.f32 %v204, %v234
    %v239 = vadd.f32 %v218, %v235
    %v240 = vmul.f32 %v236, 0.7978846
    %v241 = vmul.f32 %v237, 0.7978846
    %v242 = vmul.f32 %v238, 0.7978846
    %v243 = vmul.f32 %v239, 0.7978846
    %v244 = vtanh.pop %v240
    %v245 = vtanh.pop %v241
    %v246 = vtanh.pop %v242
    %v247 = vtanh.pop %v243
    %v248 = vadd.f32 %v244, 1.0
    %v249 = vadd.f32 %v245, 1.0
    %v250 = vadd.f32 %v246, 1.0
    %v251 = vadd.f32 %v247, 1.0
    %v252 = vmul.f32 %v220, %v248
    %v253 = vmul.f32 %v221, %v249
    %v254 = vmul.f32 %v222, %v250
    %v255 = vmul.f32 %v223, %v251
    %v256 = vpack.c.bf16 %v254, %v252
    %v257 = vpack.c.bf16 %v255, %v253
    %v258 = vld [vmem:[#allocation8] sm:$0xf]
    %v259 = vld [vmem:[#allocation8 + $0x4] sm:$0xf]
    %v260 = vld [vmem:[#allocation8 + $0x8] sm:$0xf]
    %v261 = vld [vmem:[#allocation8 + $0xc] sm:$0xf]
    %v262 = vld [vmem:[#allocation8 + $0x10] sm:$0xf]
    %v263 = vld [vmem:[#allocation8 + $0x14] sm:$0xf]
    %v264 = vld [vmem:[#allocation8 + $0x18] sm:$0xf]
    %v265 = vld [vmem:[#allocation8 + $0x1c] sm:$0xf]
    %v266 = vld [vmem:[#allocation8 + $0x20] sm:$0xf]
    %v267 = vld [vmem:[#allocation8 + $0x24] sm:$0xf]
    %v268 = vld [vmem:[#allocation8 + $0x28] sm:$0xf]
    %v269 = vld [vmem:[#allocation8 + $0x2c] sm:$0xf]
    %v270 = vld [vmem:[#allocation8 + $0x30] sm:$0xf]
    %v271 = vld [vmem:[#allocation8 + $0x34] sm:$0xf]
    %v272 = vld [vmem:[#allocation8 + $0x38] sm:$0xf]
    %v273 = vld [vmem:[#allocation8 + $0x3c] sm:$0xf]
    %v274 = vld [vmem:[#allocation8 + $0x40] sm:$0xf]
    %v275 = vld [vmem:[#allocation8 + $0x44] sm:$0xf]
    %v276 = vld [vmem:[#allocation8 + $0x48] sm:$0xf]
    %v277 = vld [vmem:[#allocation8 + $0x4c] sm:$0xf]
    %v278 = vld [vmem:[#allocation8 + $0x50] sm:$0xf]
    %v279 = vld [vmem:[#allocation8 + $0x54] sm:$0xf]
    %v280 = vld [vmem:[#allocation8 + $0x58] sm:$0xf]
    %v281 = vld [vmem:[#allocation8 + $0x5c] sm:$0xf]
    %v282 = vld [vmem:[#allocation8 + $0x60] sm:$0xf]
    %v283 = vld [vmem:[#allocation8 + $0x64] sm:$0xf]
    %v284 = vld [vmem:[#allocation8 + $0x68] sm:$0xf]
    %v285 = vld [vmem:[#allocation8 + $0x6c] sm:$0xf]
    %v286 = vld [vmem:[#allocation8 + $0x70] sm:$0xf]
    %v287 = vld [vmem:[#allocation8 + $0x74] sm:$0xf]
    %v288 = vld [vmem:[#allocation8 + $0x78] sm:$0xf]
    %v289 = vld [vmem:[#allocation8 + $0x7c] sm:$0xf]
    %v290 = vld [vmem:[%s4] sm:$0x1]
    %v292 = vperm.slane %v290, 0
    %v326 = vunpack.c.l.b16 %v258
    %v327 = vunpack.c.l.b16 %v259
    %v328 = vunpack.c.l.b16 %v260
    %v329 = vunpack.c.l.b16 %v261
    %v330 = vunpack.c.l.b16 %v262
    %v331 = vunpack.c.l.b16 %v263
    %v332 = vunpack.c.l.b16 %v264
    %v333 = vunpack.c.l.b16 %v265
    %v334 = vunpack.c.l.b16 %v266
    %v335 = vunpack.c.l.b16 %v267
    %v336 = vunpack.c.l.b16 %v268
    %v337 = vunpack.c.l.b16 %v269
    %v338 = vunpack.c.l.b16 %v270
    %v339 = vunpack.c.l.b16 %v271
    %v340 = vunpack.c.l.b16 %v272
    %v341 = vunpack.c.l.b16 %v273
    %v342 = vunpack.c.l.b16 %v274
    %v343 = vunpack.c.l.b16 %v275
    %v344 = vunpack.c.l.b16 %v276
    %v345 = vunpack.c.l.b16 %v277
    %v346 = vunpack.c.l.b16 %v278
    %v347 = vunpack.c.l.b16 %v279
    %v348 = vunpack.c.l.b16 %v280
    %v349 = vunpack.c.l.b16 %v281
    %v350 = vunpack.c.l.b16 %v282
    %v351 = vunpack.c.l.b16 %v283
    %v352 = vunpack.c.l.b16 %v284
    %v353 = vunpack.c.l.b16 %v285
    %v354 = vunpack.c.l.b16 %v286
    %v355 = vunpack.c.l.b16 %v287
    %v356 = vunpack.c.l.b16 %v288
    %v357 = vunpack.c.l.b16 %v289
    %v358 = vpack.c.b16 %v327, %v326
    %v359 = vpack.c.b16 %v329, %v328
    %v360 = vpack.c.b16 %v331, %v330
    %v361 = vpack.c.b16 %v333, %v332
    %v362 = vpack.c.b16 %v335, %v334
    %v363 = vpack.c.b16 %v337, %v336
    %v364 = vpack.c.b16 %v339, %v338
    %v365 = vpack.c.b16 %v341, %v340
    %v366 = vpack.c.b16 %v343, %v342
    %v367 = vpack.c.b16 %v345, %v344
    %v368 = vpack.c.b16 %v347, %v346
    %v369 = vpack.c.b16 %v349, %v348
    %v370 = vpack.c.b16 %v351, %v350
    %v371 = vpack.c.b16 %v353, %v352
    %v372 = vpack.c.b16 %v355, %v354
    %v373 = vpack.c.b16 %v357, %v356
    %390 = vmatpush.bf16.msra.mxu0 %v365
    %391 = vmatpush.bf16.msra.mxu0 %v364
    %392 = vmatpush.bf16.msra.mxu0 %v363
    %393 = vmatpush.bf16.msra.mxu0 %v362
    %394 = vmatpush.bf16.msra.mxu0 %v361
    %395 = vmatpush.bf16.msra.mxu0 %v360
    %396 = vmatpush.bf16.msra.mxu0 %v359
    %397 = vmatpush.bf16.msra.mxu0 %v358
    %398 = vmatmul.bf16.gmra.mxu0 %v256
    %v399 = vpop.f32.mrf.mxu0
    %v400 = vadd.f32 %v292, %v399
    %v401 = vpop.f32.mrf.mxu0
    %v402 = vadd.f32 %v292, %v401
    %403 = vdwg.mxu0
    %404 = vmatpush.bf16.msra.mxu0 %v373
    %405 = vmatpush.bf16.msra.mxu0 %v372
    %406 = vmatpush.bf16.msra.mxu0 %v371
    %407 = vmatpush.bf16.msra.mxu0 %v370
    %408 = vmatpush.bf16.msra.mxu0 %v369
    %409 = vmatpush.bf16.msra.mxu0 %v368
    %410 = vmatpush.bf16.msra.mxu0 %v367
    %411 = vmatpush.bf16.msra.mxu0 %v366
    %412 = vmatmul.bf16.gmra.mxu0 %v257
    %v413 = vpop.f32.mrf.mxu0
    %v414 = vadd.f32 %v400, %v413
    %v415 = vpop.f32.mrf.mxu0
    %v416 = vadd.f32 %v402, %v415
    %417 = vdwg.mxu0
    %418 = vst [vmem:[#allocation10] sm:$0xff] %v414
    %419 = vst [vmem:[#allocation10 + $0x8] sm:$0xff] %v416
    // Predicated region
    $region38: #{tpu_custom_call.1} parent=1 // pred_check
      _
    $region39: #{tpu_custom_call.1} parent=1 // pred_check_branch
      %421 = sbr.rel (0) target = $region41
    $region40: #{tpu_custom_call.1} parent=1 // pred_region
      %423 = vsyncadd [#allocation4], 0
      %s424 = sshll.u32 [#allocation10], 4
      %s425 = int_to_ptr.vmem [resolvable:$true] %s424
      %s426 = sshll.u32 %s5, 4
      %s427 = int_to_ptr.hbm [resolvable:$true] %s426
      %432 = dma.vmem_to_hbm [thread:$0]  %s425, 256, %s427, [#allocation4], 128, 128, 8
    $region41: #{tpu_custom_call.1} parent=1 // pred_fallthru
      _
    // Predicated region
    $region42: #{tpu_custom_call.1} parent=1 // pred_check
      _
    $region43: #{tpu_custom_call.1} parent=1 // pred_check_branch
      %434 = sbr.rel (0) target = $region45
    $region44: #{tpu_custom_call.1} parent=1 // pred_region
      %436 = dma.done [#allocation4], 256
    $region45: #{tpu_custom_call.1} parent=1 // pred_fallthru
      _
    %437 = vsyncpa [#allocation3], 1
    %438 = vsyncpa [#allocation6], 1
    %439 = vsyncpa [#allocation9], 1
    %440 = vsyncpa [#allocation4], 1

</llo_original>
